<compile_context>
chip_gen: v6e
topology: v6e:2x2x1
jax: 0.10.0
libtpu: 0.0.40
codegen_flags: <defaults>
</compile_context>

<pallas_src>
import math
from functools import partial

import jax
import jax.numpy as jnp
from jax import lax
from jax.experimental import pallas as pl
from jax.experimental.pallas import tpu as pltpu


def _round_up(x, m):
    return (x + m - 1) // m * m


# ---------------------------------------------------------------------------
# Pallas kernel: fused (mu matmul) + (var matmul) + bias + sqrt(var)*eps.
# Blocks:
#   cols_ref  : (K, tp)    bf16   (lane dim = tp, multiple of 128)
#   wmu_ref   : (Cout, K)  bf16
#   wsig2_ref : (Cout, K)  bf16
#   bmu_ref   : (Cout, 1)  f32
#   bsig2_ref : (Cout, 1)  f32
#   eps_ref   : (Cout, tp) bf16
#   out_ref   : (Cout, tp) f32
# ---------------------------------------------------------------------------
def _bayes_conv_kernel(cols_ref, wmu_ref, wsig2_ref, bmu_ref, bsig2_ref,
                       eps_ref, out_ref):
    cols = cols_ref[...]                                        # (K, tp) bf16
    # mean branch: W.mu @ cols  (f32 accumulation on the MXU)
    mu = jnp.dot(wmu_ref[...], cols,
                 preferred_element_type=jnp.float32) + bmu_ref[...]
    # variance branch: square in f32, round to bf16, W.sigma^2 @ cols^2
    cols_sq = jnp.square(cols.astype(jnp.float32)).astype(jnp.bfloat16)
    var = jnp.dot(wsig2_ref[...], cols_sq,
                  preferred_element_type=jnp.float32) + bsig2_ref[...]
    out_ref[...] = mu + jnp.sqrt(var) * eps_ref[...].astype(jnp.float32)


def _im2col_nkp(x, kh, kw, stride, padding, dilation):
    """x: (N, C, H, W) -> cols: (N, C*kh*kw, Hout*Wout), plus (Hout, Wout).

    K flattening order is (C, kh, kw) with C outermost, matching
    torch weight.reshape(Cout, C*kh*kw)."""
    N, C, H, W = x.shape
    sh, sw = stride
    ph, pw = padding
    dh, dw = dilation
    h_out = (H + 2 * ph - dh * (kh - 1) - 1) // sh + 1
    w_out = (W + 2 * pw - dw * (kw - 1) - 1) // sw + 1
    xp = jnp.pad(x, ((0, 0), (0, 0), (ph, ph), (pw, pw)))
    patches = []
    for i in range(kh):
        for j in range(kw):
            patches.append(xp[:, :,
                              i * dh: i * dh + sh * h_out: sh,
                              j * dw: j * dw + sw * w_out: sw])   # (N,C,Hout,Wout)
    cols = jnp.stack(patches, axis=2)                 # (N, C, kh*kw, Hout, Wout)
    cols = cols.reshape(N, C * kh * kw, h_out * w_out)
    return cols, h_out, w_out


def meta_bayes_conv2d_forward(x, w_mu, w_sigma, b_mu, b_sigma, eps_nchw,
                              stride=(1, 1), padding=(1, 1), dilation=(1, 1),
                              max_tp=1024):
    """x: (N, C, H, W).  w_*: (Cout, Cin, kh, kw).  b_*: (Cout,) or None.
    eps_nchw: (N, Cout, Hout, Wout) standard-normal noise.
    Returns out: (N, Cout, Hout, Wout) float32."""
    N, C, H, W = x.shape
    Cout, Cin, kh, kw = w_mu.shape
    assert Cin == C, "groups != 1 not supported"
    K = C * kh * kw

    # bf16 inputs for the MXU (accumulation stays f32 inside the kernel).
    cols, h_out, w_out = _im2col_nkp(x.astype(jnp.bfloat16), kh, kw,
                                     stride, padding, dilation)
    P = h_out * w_out
    tp = min(max_tp, _round_up(P, 128))       # lane-dense spatial tile
    Pp = _round_up(P, tp)
    if Pp != P:
        # zero-padded columns give var = b_sigma^2 >= 0 -> sqrt stays NaN-free.
        cols = jnp.pad(cols, ((0, 0), (0, 0), (0, Pp - P)))

    wmu_mat = w_mu.reshape(Cout, K).astype(jnp.bfloat16)
    wsig2_mat = (w_sigma.astype(jnp.float32) ** 2).reshape(Cout, K).astype(jnp.bfloat16)

    if b_mu is None:
        b_mu = jnp.zeros((Cout,), jnp.float32)
        b_sigma = jnp.zeros((Cout,), jnp.float32)
    bmu_col = b_mu.astype(jnp.float32).reshape(Cout, 1)
    bsig2_col = (b_sigma.astype(jnp.float32) ** 2).reshape(Cout, 1)

    # epsilon consumed in NCHW-flat layout: pure reshape, no transpose.
    eps = eps_nchw.reshape(N, Cout, P).astype(jnp.bfloat16)
    if Pp != P:
        eps = jnp.pad(eps, ((0, 0), (0, 0), (0, Pp - P)))

    grid = (N, Pp // tp)
    out_flat = pl.pallas_call(
        _bayes_conv_kernel,
        out_shape=jax.ShapeDtypeStruct((N, Cout, Pp), jnp.float32),
        grid=grid,
        in_specs=[
            pl.BlockSpec((None, K, tp), lambda n, p: (n, 0, p)),      # cols
            pl.BlockSpec((Cout, K), lambda n, p: (0, 0)),             # W.mu
            pl.BlockSpec((Cout, K), lambda n, p: (0, 0)),             # W.sigma^2
            pl.BlockSpec((Cout, 1), lambda n, p: (0, 0)),             # b.mu
            pl.BlockSpec((Cout, 1), lambda n, p: (0, 0)),             # b.sigma^2
            pl.BlockSpec((None, Cout, tp), lambda n, p: (n, 0, p)),   # epsilon
        ],
        out_specs=pl.BlockSpec((None, Cout, tp), lambda n, p: (n, 0, p)),
        compiler_params=pltpu.CompilerParams(
            dimension_semantics=("parallel", "parallel"),
            # Let XLA fuse the im2col / eps reshape+convert producers into the
            # pallas input DMA instead of materializing them in HBM.
            allow_input_fusion=[True, False, False, False, False, True],
        ),
    )(cols, wmu_mat, wsig2_mat, bmu_col, bsig2_col, eps)

    # (N, Cout, Pp) is already NCHW-flat: slice padding, reshape (no transpose).
    out = out_flat[:, :, :P].reshape(N, Cout, h_out, w_out)
    return out


# ---------------------------------------------------------------------------
# Pure-JAX reference (for correctness check against the Pallas kernel)
# ---------------------------------------------------------------------------
def _conv_ref(lhs, rhs, stride, padding, dilation):
    dn = lax.conv_dimension_numbers(lhs.shape, rhs.shape, ("NCHW", "OIHW", "NCHW"))
    pad = [(padding[0], padding[0]), (padding[1], padding[1])]
    return lax.conv_general_dilated(lhs, rhs, stride, pad, rhs_dilation=dilation,
                                    dimension_numbers=dn,
                                    precision=lax.Precision.HIGHEST)


def _reference_forward(x, w_mu, w_sigma, b_mu, b_sigma, eps,
                       stride, padding, dilation, quantize=False):
    """quantize=True mirrors the kernel's bf16 rounding of x, weights, x^2, eps
    (math itself done in f32) for a tight numerical comparison."""
    f32 = jnp.float32

    def q(a):
        return a.astype(jnp.bfloat16).astype(f32) if quantize else a.astype(f32)

    x_q = q(x)
    x2_q = q(x_q ** 2)
    w_mu_q = q(w_mu)
    w_sig2_q = q(w_sigma.astype(f32) ** 2)
    eps_q = q(eps)

    act_mu = _conv_ref(x_q, w_mu_q, stride, padding, dilation)
    act_mu = act_mu + b_mu.astype(f32)[None, :, None, None]
    act_sig = _conv_ref(x2_q, w_sig2_q, stride, padding, dilation)
    act_sig = act_sig + (b_sigma.astype(f32) ** 2)[None, :, None, None]
    return act_mu + jnp.sqrt(act_sig) * eps_q


if __name__ == "__main__":
    # Module config: MetaBayesConv2d(in_channels=4, out_channels=8, kernel_size=3,
    #                                stride=1, padding=1, sigma_init=sqrt(0.001),
    #                                bias=True)
    in_channels, out_channels = 4, 8
    kh, kw = 3, 3
    stride, padding, dilation = (1, 1), (1, 1), (1, 1)
    sigma_init = 0.001 ** 0.5
    N, H, W = 2, 16, 16

    key = jax.random.PRNGKey(0)
    k_x, k_wmu, k_eps = jax.random.split(key, 3)

    # Deterministic parameter init, mirroring reset_parameters():
    fan_in = in_channels * kh * kw
    fan_out = out_channels * kh * kw
    bound = math.sqrt(6.0 / (fan_in + fan_out))
    w_mu = jax.random.uniform(k_wmu, (out_channels, in_channels, kh, kw),
                              jnp.float32, minval=-bound, maxval=bound)
    w_sigma = jnp.full((out_channels, in_channels, kh, kw), sigma_init, jnp.float32)
    b_mu = jnp.zeros((out_channels,), jnp.float32)
    b_sigma = jnp.full((out_channels,), sigma_init, jnp.float32)

    x = jax.random.normal(k_x, (N, in_channels, H, W), jnp.float32)

    h_out = (H + 2 * padding[0] - dilation[0] * (kh - 1) - 1) // stride[0] + 1
    w_out = (W + 2 * padding[1] - dilation[1] * (kw - 1) - 1) // stride[1] + 1
    eps = jax.random.normal(k_eps, (N, out_channels, h_out, w_out), jnp.float32)

    fwd = jax.jit(partial(meta_bayes_conv2d_forward,
                          stride=stride, padding=padding, dilation=dilation))
    out = fwd(x, w_mu, w_sigma, b_mu, b_sigma, eps)
    jax.block_until_ready(out)
    assert out.shape == (N, out_channels, h_out, w_out), out.shape

    # Tight check: reference using the same bf16-rounded operands (f32 math).
    ref_q = _reference_forward(x, w_mu, w_sigma, b_mu, b_sigma, eps,
                               stride, padding, dilation, quantize=True)
    assert jnp.allclose(out, ref_q, atol=1e-3, rtol=1e-3), \
        float(jnp.max(jnp.abs(out - ref_q)))

    # Loose sanity check against the full-f32 PyTorch-equivalent math.
    ref_f32 = _reference_forward(x, w_mu, w_sigma, b_mu, b_sigma, eps,
                                 stride, padding, dilation, quantize=False)
    assert jnp.allclose(out, ref_f32, atol=1e-1, rtol=1e-1), \
        float(jnp.max(jnp.abs(out - ref_f32)))

    print("KERNEL_OK")
</pallas_src>

<mosaic_0001>
module attributes {stable_mosaic.version = 11 : i64} {
  func.func @_bayes_conv_kernel(%arg0: i32, %arg1: i32, %arg2: memref<1x36x256xbf16, #tpu.memory_space<vmem>>, %arg3: memref<8x36xbf16, #tpu.memory_space<vmem>>, %arg4: memref<8x36xbf16, #tpu.memory_space<vmem>>, %arg5: memref<8x1xf32, #tpu.memory_space<vmem>>, %arg6: memref<8x1xf32, #tpu.memory_space<vmem>>, %arg7: memref<1x8x256xbf16, #tpu.memory_space<vmem>>, %arg8: memref<1x8x256xf32, #tpu.memory_space<vmem>>) attributes {dimension_semantics = [#tpu.dimension_semantics<parallel>, #tpu.dimension_semantics<parallel>], iteration_bounds = array<i64: 2, 1>, scalar_prefetch = 0 : i64, scratch_operands = 0 : i64, tpu.core_type = #tpu.core_type<tc>, window_params = [{transform_indices = @transform_0, window_bounds = array<i64: 1, 36, 256>}, {pipeline_mode = #tpu.pipeline_mode<synchronous>, transform_indices = @transform_1, window_bounds = array<i64: 8, 36>}, {pipeline_mode = #tpu.pipeline_mode<synchronous>, transform_indices = @transform_2, window_bounds = array<i64: 8, 36>}, {pipeline_mode = #tpu.pipeline_mode<synchronous>, transform_indices = @transform_3, window_bounds = array<i64: 8, 1>}, {pipeline_mode = #tpu.pipeline_mode<synchronous>, transform_indices = @transform_4, window_bounds = array<i64: 8, 1>}, {transform_indices = @transform_5, window_bounds = array<i64: 1, 8, 256>}, {transform_indices = @transform_6, window_bounds = array<i64: 1, 8, 256>}]} {
    %c0 = arith.constant 0 : index
    %c0_0 = arith.constant 0 : index
    %c0_1 = arith.constant 0 : index
    %0 = vector.load %arg2[%c0, %c0_0, %c0_1] : memref<1x36x256xbf16, #tpu.memory_space<vmem>>, vector<1x36x256xbf16>
    %1 = vector.shape_cast %0 : vector<1x36x256xbf16> to vector<36x256xbf16>
    %c0_2 = arith.constant 0 : index
    %c0_3 = arith.constant 0 : index
    %2 = vector.load %arg3[%c0_2, %c0_3] : memref<8x36xbf16, #tpu.memory_space<vmem>>, vector<8x36xbf16>
    %cst = arith.constant dense<0.000000e+00> : vector<8x256xf32>
    %3 = tpu.matmul %2, %1, %cst {dimension_numbers = #tpu.dot_dimension_numbers<[1], [0], [0], [1], [0, 0, 1, 1], [], []>} : vector<8x36xbf16>, vector<36x256xbf16>, vector<8x256xf32> -> vector<8x256xf32>
    %c0_4 = arith.constant 0 : index
    %c0_5 = arith.constant 0 : index
    %4 = vector.load %arg5[%c0_4, %c0_5] : memref<8x1xf32, #tpu.memory_space<vmem>>, vector<8x1xf32>
    %5 = vector.broadcast %4 : vector<8x1xf32> to vector<8x256xf32>
    %6 = arith.addf %3, %5 : vector<8x256xf32>
    %7 = arith.extf %1 : vector<36x256xbf16> to vector<36x256xf32>
    %8 = arith.mulf %7, %7 : vector<36x256xf32>
    %9 = arith.truncf %8 : vector<36x256xf32> to vector<36x256xbf16>
    %c0_6 = arith.constant 0 : index
    %c0_7 = arith.constant 0 : index
    %10 = vector.load %arg4[%c0_6, %c0_7] : memref<8x36xbf16, #tpu.memory_space<vmem>>, vector<8x36xbf16>
    %cst_8 = arith.constant dense<0.000000e+00> : vector<8x256xf32>
    %11 = tpu.matmul %10, %9, %cst_8 {dimension_numbers = #tpu.dot_dimension_numbers<[1], [0], [0], [1], [0, 0, 1, 1], [], []>} : vector<8x36xbf16>, vector<36x256xbf16>, vector<8x256xf32> -> vector<8x256xf32>
    %c0_9 = arith.constant 0 : index
    %c0_10 = arith.constant 0 : index
    %12 = vector.load %arg6[%c0_9, %c0_10] : memref<8x1xf32, #tpu.memory_space<vmem>>, vector<8x1xf32>
    %13 = vector.broadcast %12 : vector<8x1xf32> to vector<8x256xf32>
    %14 = arith.addf %11, %13 : vector<8x256xf32>
    %15 = math.sqrt %14 : vector<8x256xf32>
    %c0_11 = arith.constant 0 : index
    %c0_12 = arith.constant 0 : index
    %c0_13 = arith.constant 0 : index
    %16 = vector.load %arg7[%c0_11, %c0_12, %c0_13] : memref<1x8x256xbf16, #tpu.memory_space<vmem>>, vector<1x8x256xbf16>
    %17 = vector.shape_cast %16 : vector<1x8x256xbf16> to vector<8x256xbf16>
    %18 = arith.extf %17 : vector<8x256xbf16> to vector<8x256xf32>
    %19 = arith.mulf %15, %18 : vector<8x256xf32>
    %20 = arith.addf %6, %19 : vector<8x256xf32>
    %c0_14 = arith.constant 0 : index
    %c0_15 = arith.constant 0 : index
    %c0_16 = arith.constant 0 : index
    %21 = vector.load %arg8[%c0_14, %c0_15, %c0_16] : memref<1x8x256xf32, #tpu.memory_space<vmem>>, vector<1x8x256xf32>
    %22 = vector.shape_cast %21 : vector<1x8x256xf32> to vector<8x256xf32>
    %23 = vector.shape_cast %20 : vector<8x256xf32> to vector<1x8x256xf32>
    tpu.vector_store %arg8[%c0_14, %c0_15, %c0_16], %23 {strides = array<i32>} : memref<1x8x256xf32, #tpu.memory_space<vmem>>, vector<1x8x256xf32>,
    return
  }
  func.func @transform_0(%arg0: i32, %arg1: i32) -> (i32, i32, i32) {
    %c0_i32 = arith.constant 0 : i32
    %c0_i32_0 = arith.constant 0 : i32
    return %arg0, %c0_i32, %arg1 : i32, i32, i32
  }
  func.func @transform_1(%arg0: i32, %arg1: i32) -> (i32, i32) {
    %c0_i32 = arith.constant 0 : i32
    %c0_i32_0 = arith.constant 0 : i32
    %c0_i32_1 = arith.constant 0 : i32
    return %c0_i32, %c0_i32_0 : i32, i32
  }
  func.func @transform_2(%arg0: i32, %arg1: i32) -> (i32, i32) {
    %c0_i32 = arith.constant 0 : i32
    %c0_i32_0 = arith.constant 0 : i32
    %c0_i32_1 = arith.constant 0 : i32
    return %c0_i32, %c0_i32_0 : i32, i32
  }
  func.func @transform_3(%arg0: i32, %arg1: i32) -> (i32, i32) {
    %c0_i32 = arith.constant 0 : i32
    %c0_i32_0 = arith.constant 0 : i32
    %c0_i32_1 = arith.constant 0 : i32
    return %c0_i32, %c0_i32_0 : i32, i32
  }
  func.func @transform_4(%arg0: i32, %arg1: i32) -> (i32, i32) {
    %c0_i32 = arith.constant 0 : i32
    %c0_i32_0 = arith.constant 0 : i32
    %c0_i32_1 = arith.constant 0 : i32
    return %c0_i32, %c0_i32_0 : i32, i32
  }
  func.func @transform_5(%arg0: i32, %arg1: i32) -> (i32, i32, i32) {
    %c0_i32 = arith.constant 0 : i32
    %c0_i32_0 = arith.constant 0 : i32
    return %arg0, %c0_i32, %arg1 : i32, i32, i32
  }
  func.func @transform_6(%arg0: i32, %arg1: i32) -> (i32, i32, i32) {
    %c0_i32 = arith.constant 0 : i32
    %c0_i32_0 = arith.constant 0 : i32
    return %arg0, %c0_i32, %arg1 : i32, i32, i32
  }
}

</mosaic_0001>

<llo_original>
// kernel: meta_bayes_conv2d_forward.1
$region0: #{meta_bayes_conv2d_forward.1}
  #allocation0 [shape = 'u32[]', space=smem, size = 0x4, offset = 0x4, fixed_abs, tag = 'smem constant byte address 0x4 - core index']
  #allocation1 [shape = 'u32[144,128]{1,0:T(1,128)}', space=vmem, size = 0x12000, scoped, tag = 'internal scratch']
  %s0 = inlined_call_operand.vmem [shape: bf16[2,36,256], index: 0, kind: input, shape index: {}]
  %s1 = inlined_call_operand.vmem [shape: bf16[8,36], index: 1, kind: input, shape index: {}]
  %s2 = inlined_call_operand.vmem [shape: bf16[8,36], index: 2, kind: input, shape index: {}]
  %s3 = inlined_call_operand.vmem [shape: f32[8,1], index: 3, kind: input, shape index: {}]
  %s4 = inlined_call_operand.vmem [shape: f32[8,1], index: 4, kind: input, shape index: {}]
  %s5 = inlined_call_operand.vmem [shape: bf16[2,8,256], index: 5, kind: input, shape index: {}]
  %s6 = inlined_call_operand.vmem [shape: f32[2,8,256], index: 6, kind: output, shape index: {}]
  %s7 = sld [smem:[#allocation0]]
  $region57: #{meta_bayes_conv2d_forward.1} parent=0
    _
  %s9 = ssub.s32 1, %s7
  %s10 = scalar_select 0, %s9, %s7
  loop: start=0, step=1, limit=4
  $region2: #{meta_bayes_conv2d_forward.1} parent=0 // loop_pre_header
    _
  $region3: #{meta_bayes_conv2d_forward.1} parent=0 // loop_header
    %s12 = sphi 0, %s16
    %p13 = scmp.ge.s32.totalorder %s12, 4
    %s19 = sphi 0, %s31
    %s20 = sphi 0, %s27
    %s21 = sphi 0, %s19
    %s22 = sphi 0, %s20
    %s23 = sphi 0, %s21
    %s24 = sphi 0, %s22
    %s36 = sphi 0, %s38
    %s39 = sphi 0, %s36
    %s40 = sphi 0, %s39
    %s56 = sphi 0, %s40
    %s60 = sphi 0, %s60
    %s62 = sphi 0, %s60
    %s63 = sphi 0, %s62
    %s77 = sphi 0, %s63
    %s81 = sphi 0, %s81
    %s83 = sphi 0, %s81
    %s84 = sphi 0, %s83
    %s98 = sphi 0, %s84
    %s102 = sphi 0, %s102
    %s104 = sphi 0, %s102
    %s105 = sphi 0, %s104
    %s119 = sphi 0, %s105
    %s123 = sphi 0, %s123
    %s125 = sphi 0, %s123
    %s126 = sphi 0, %s125
    %s140 = sphi 0, %s126
    %s148 = sphi 0, %s150
    %s151 = sphi 0, %s148
    %s152 = sphi 0, %s151
    %s168 = sphi 0, %s152
    %s176 = sphi 0, %s178
    %s179 = sphi 0, %s176
    %s180 = sphi 0, %s179
    %s196 = sphi 0, %s180
  $region4: #{meta_bayes_conv2d_forward.1} parent=0 // loop_header_branch
    %15 = sbr.rel (%p13) target = $region8
  $region5: #{meta_bayes_conv2d_forward.1} parent=0 // loop_body
    %s17 = ssub.s32 %s12, 1
    %s18 = ssub.s32 %s12, 2
    %s25 = sadd.s32 1, %s20
    %p26 = scmp.ge.s32.totalorder %s25, 1
    %s27 = scalar_select %p26, 0, %s25
    %s28 = sadd.s32 1, %s19
    %s29 = scalar_select %p26, %s28, %s19
    %p30 = scmp.ge.s32.totalorder %s29, 2
    %s31 = scalar_select %p30, 0, %s29
    %s32 = ssub.s32 %s19, %s31
    %s33 = ssub.s32 %s20, %s27
    %s34 = sor.u32 %s32, %s33
    %p35 = scmp.eq.s32.totalorder %s34, 0
    %s37 = sadd.s32 %s36, 1
    %s38 = scalar_select %p35, %s36, %s37
    %p41 = pneg %p35
    %p42 = scmp.eq.s32.totalorder %s12, 1
    %p43 = por %p41, %p42
    %p44 = scmp.ne.s32.totalorder %s36, %s39
    %p45 = scmp.eq.s32.totalorder %s12, 0
    %p46 = por %p44, %p45
    %p47 = scmp.ne.s32.totalorder %s36, %s39
    %p48 = scmp.eq.s32.totalorder %s17, 1
    %p49 = por %p47, %p48
    %p50 = scmp.ne.s32.totalorder %s39, %s40
    %p51 = scmp.eq.s32.totalorder %s17, 0
    %p52 = por %p50, %p51
    %p53 = scmp.ne.s32.totalorder %s39, %s40
    %p54 = scmp.eq.s32.totalorder %s18, 1
    %p55 = por %p53, %p54
    %p57 = scmp.ne.s32.totalorder %s40, %s56
    %p58 = scmp.eq.s32.totalorder %s18, 0
    %p59 = por %p57, %p58
    %s61 = sadd.s32 %s60, 1
    %p64 = scmp.eq.s32.totalorder %s12, 1
    %p65 = scmp.ne.s32.totalorder %s60, %s62
    %p66 = scmp.eq.s32.totalorder %s12, 0
    %p67 = por %p65, %p66
    %p68 = scmp.ne.s32.totalorder %s60, %s62
    %p69 = scmp.eq.s32.totalorder %s17, 1
    %p70 = por %p68, %p69
    %p71 = scmp.ne.s32.totalorder %s62, %s63
    %p72 = scmp.eq.s32.totalorder %s17, 0
    %p73 = por %p71, %p72
    %p74 = scmp.ne.s32.totalorder %s62, %s63
    %p75 = scmp.eq.s32.totalorder %s18, 1
    %p76 = por %p74, %p75
    %p78 = scmp.ne.s32.totalorder %s63, %s77
    %p79 = scmp.eq.s32.totalorder %s18, 0
    %p80 = por %p78, %p79
    %s82 = sadd.s32 %s81, 1
    %p85 = scmp.eq.s32.totalorder %s12, 1
    %p86 = scmp.ne.s32.totalorder %s81, %s83
    %p87 = scmp.eq.s32.totalorder %s12, 0
    %p88 = por %p86, %p87
    %p89 = scmp.ne.s32.totalorder %s81, %s83
    %p90 = scmp.eq.s32.totalorder %s17, 1
    %p91 = por %p89, %p90
    %p92 = scmp.ne.s32.totalorder %s83, %s84
    %p93 = scmp.eq.s32.totalorder %s17, 0
    %p94 = por %p92, %p93
    %p95 = scmp.ne.s32.totalorder %s83, %s84
    %p96 = scmp.eq.s32.totalorder %s18, 1
    %p97 = por %p95, %p96
    %p99 = scmp.ne.s32.totalorder %s84, %s98
    %p100 = scmp.eq.s32.totalorder %s18, 0
    %p101 = por %p99, %p100
    %s103 = sadd.s32 %s102, 1
    %p106 = scmp.eq.s32.totalorder %s12, 1
    %p107 = scmp.ne.s32.totalorder %s102, %s104
    %p108 = scmp.eq.s32.totalorder %s12, 0
    %p109 = por %p107, %p108
    %p110 = scmp.ne.s32.totalorder %s102, %s104
    %p111 = scmp.eq.s32.totalorder %s17, 1
    %p112 = por %p110, %p111
    %p113 = scmp.ne.s32.totalorder %s104, %s105
    %p114 = scmp.eq.s32.totalorder %s17, 0
    %p115 = por %p113, %p114
    %p116 = scmp.ne.s32.totalorder %s104, %s105
    %p117 = scmp.eq.s32.totalorder %s18, 1
    %p118 = por %p116, %p117
    %p120 = scmp.ne.s32.totalorder %s105, %s119
    %p121 = scmp.eq.s32.totalorder %s18, 0
    %p122 = por %p120, %p121
    %s124 = sadd.s32 %s123, 1
    %p127 = scmp.eq.s32.totalorder %s12, 1
    %p128 = scmp.ne.s32.totalorder %s123, %s125
    %p129 = scmp.eq.s32.totalorder %s12, 0
    %p130 = por %p128, %p129
    %p131 = scmp.ne.s32.totalorder %s123, %s125
    %p132 = scmp.eq.s32.totalorder %s17, 1
    %p133 = por %p131, %p132
    %p134 = scmp.ne.s32.totalorder %s125, %s126
    %p135 = scmp.eq.s32.totalorder %s17, 0
    %p136 = por %p134, %p135
    %p137 = scmp.ne.s32.totalorder %s125, %s126
    %p138 = scmp.eq.s32.totalorder %s18, 1
    %p139 = por %p137, %p138
    %p141 = scmp.ne.s32.totalorder %s126, %s140
    %p142 = scmp.eq.s32.totalorder %s18, 0
    %p143 = por %p141, %p142
    %s144 = ssub.s32 %s19, %s31
    %s145 = ssub.s32 %s20, %s27
    %s146 = sor.u32 %s144, %s145
    %p147 = scmp.eq.s32.totalorder %s146, 0
    %s149 = sadd.s32 %s148, 1
    %s150 = scalar_select %p147, %s148, %s149
    %p153 = pneg %p147
    %p154 = scmp.eq.s32.totalorder %s12, 1
    %p155 = por %p153, %p154
    %p156 = scmp.ne.s32.totalorder %s148, %s151
    %p157 = scmp.eq.s32.totalorder %s12, 0
    %p158 = por %p156, %p157
    %p159 = scmp.ne.s32.totalorder %s148, %s151
    %p160 = scmp.eq.s32.totalorder %s17, 1
    %p161 = por %p159, %p160
    %p162 = scmp.ne.s32.totalorder %s151, %s152
    %p163 = scmp.eq.s32.totalorder %s17, 0
    %p164 = por %p162, %p163
    %p165 = scmp.ne.s32.totalorder %s151, %s152
    %p166 = scmp.eq.s32.totalorder %s18, 1
    %p167 = por %p165, %p166
    %p169 = scmp.ne.s32.totalorder %s152, %s168
    %p170 = scmp.eq.s32.totalorder %s18, 0
    %p171 = por %p169, %p170
    %s172 = ssub.s32 %s19, %s31
    %s173 = ssub.s32 %s20, %s27
    %s174 = sor.u32 %s172, %s173
    %p175 = scmp.eq.s32.totalorder %s174, 0
    %s177 = sadd.s32 %s176, 1
    %s178 = scalar_select %p175, %s176, %s177
    %p181 = pneg %p175
    %p182 = scmp.eq.s32.totalorder %s12, 1
    %p183 = por %p181, %p182
    %p184 = scmp.ne.s32.totalorder %s176, %s179
    %p185 = scmp.eq.s32.totalorder %s12, 0
    %p186 = por %p184, %p185
    %p187 = scmp.ne.s32.totalorder %s176, %s179
    %p188 = scmp.eq.s32.totalorder %s17, 1
    %p189 = por %p187, %p188
    %p190 = scmp.ne.s32.totalorder %s179, %s180
    %p191 = scmp.eq.s32.totalorder %s17, 0
    %p192 = por %p190, %p191
    %p193 = scmp.ne.s32.totalorder %s179, %s180
    %p194 = scmp.eq.s32.totalorder %s18, 1
    %p195 = por %p193, %p194
    %p197 = scmp.ne.s32.totalorder %s180, %s196
    %p198 = scmp.eq.s32.totalorder %s18, 0
    %p199 = por %p197, %p198
    %p200 = scmp.le.s32.totalorder 1, %s12
    %p201 = scmp.lt.s32.totalorder %s12, 3
    %p202 = pnand %p200, %p201
    %p203 = pneg %p202
    // Predicated region
    $region9: #{meta_bayes_conv2d_forward.1} parent=5 // pred_check
      _
    $region10: #{meta_bayes_conv2d_forward.1} parent=5 // pred_check_branch
      %205 = sbr.rel (%p202) target = $region12
    $region11: #{meta_bayes_conv2d_forward.1} parent=5 // pred_region
      %s206 = ssub.s32 %s12, 1
      // Predicated region
      $region13: #{meta_bayes_conv2d_forward.1} parent=11 // pred_check
        %p207 = pneg %p73
      $region14: #{meta_bayes_conv2d_forward.1} parent=11 // pred_check_branch
        %209 = sbr.rel (%p207) target = $region16
      $region15: #{meta_bayes_conv2d_forward.1} parent=11 // pred_region
        _
      $region16: #{meta_bayes_conv2d_forward.1} parent=11 // pred_fallthru
        _
      // Predicated region
      $region17: #{meta_bayes_conv2d_forward.1} parent=11 // pred_check
        %p210 = pneg %p94
      $region18: #{meta_bayes_conv2d_forward.1} parent=11 // pred_check_branch
        %212 = sbr.rel (%p210) target = $region20
      $region19: #{meta_bayes_conv2d_forward.1} parent=11 // pred_region
        _
      $region20: #{meta_bayes_conv2d_forward.1} parent=11 // pred_fallthru
        _
      // Predicated region
      $region21: #{meta_bayes_conv2d_forward.1} parent=11 // pred_check
        %p213 = pneg %p115
      $region22: #{meta_bayes_conv2d_forward.1} parent=11 // pred_check_branch
        %215 = sbr.rel (%p213) target = $region24
      $region23: #{meta_bayes_conv2d_forward.1} parent=11 // pred_region
        _
      $region24: #{meta_bayes_conv2d_forward.1} parent=11 // pred_fallthru
        _
      // Predicated region
      $region25: #{meta_bayes_conv2d_forward.1} parent=11 // pred_check
        %p216 = pneg %p136
      $region26: #{meta_bayes_conv2d_forward.1} parent=11 // pred_check_branch
        %218 = sbr.rel (%p216) target = $region28
      $region27: #{meta_bayes_conv2d_forward.1} parent=11 // pred_region
        _
      $region28: #{meta_bayes_conv2d_forward.1} parent=11 // pred_fallthru
        _
    $region12: #{meta_bayes_conv2d_forward.1} parent=5 // pred_fallthru
      _
    %p219 = scmp.lt.s32.totalorder %s12, 2
    // Predicated region
    $region29: #{meta_bayes_conv2d_forward.1} parent=5 // pred_check
      %p220 = pneg %p219
    $region30: #{meta_bayes_conv2d_forward.1} parent=5 // pred_check_branch
      %222 = sbr.rel (%p220) target = $region32
    $region31: #{meta_bayes_conv2d_forward.1} parent=5 // pred_region
      // Predicated region
      $region33: #{meta_bayes_conv2d_forward.1} parent=31 // pred_check
        %p223 = pneg %p46
      $region34: #{meta_bayes_conv2d_forward.1} parent=31 // pred_check_branch
        %225 = sbr.rel (%p223) target = $region36
      $region35: #{meta_bayes_conv2d_forward.1} parent=31 // pred_region
        %s226 = smul.u32 2, %s20
        %p227 = scmp.lt.s32.totalorder %s19, 1
        %s228 = scalar_select %p227, %s19, 1
        %p229 = scmp.lt.s32.totalorder %s226, 1
        %s230 = scalar_select %p229, %s226, 1
        %s231 = smul.addr %s228, 10
        %s232 = sadd.s32 %s230, %s231
        %s233 = smul.addr %s232, 4
        %s234 = scalar_lea.vmem %s0, %s233
        %s235 = smul.u32 2, %s20
      $region36: #{meta_bayes_conv2d_forward.1} parent=31 // pred_fallthru
        _
      // Predicated region
      $region37: #{meta_bayes_conv2d_forward.1} parent=31 // pred_check
        %p236 = pneg %p158
      $region38: #{meta_bayes_conv2d_forward.1} parent=31 // pred_check_branch
        %238 = sbr.rel (%p236) target = $region40
      $region39: #{meta_bayes_conv2d_forward.1} parent=31 // pred_region
        %s239 = smul.u32 2, %s20
        %p240 = scmp.lt.s32.totalorder %s19, 1
        %s241 = scalar_select %p240, %s19, 1
        %p242 = scmp.lt.s32.totalorder %s239, 1
        %s243 = scalar_select %p242, %s239, 1
        %s244 = smul.addr %s241, 2
        %s245 = sadd.s32 %s243, %s244
        %s246 = smul.addr %s245, 4
        %s247 = scalar_lea.vmem %s5, %s246
        %s248 = smul.u32 2, %s20
      $region40: #{meta_bayes_conv2d_forward.1} parent=31 // pred_fallthru
        _
    $region32: #{meta_bayes_conv2d_forward.1} parent=5 // pred_fallthru
      _
    %p249 = scmp.le.s32.totalorder 1, %s12
    %p250 = scmp.lt.s32.totalorder %s12, 3
    %p251 = pnand %p249, %p250
    %p252 = pneg %p251
    // Predicated region
    $region41: #{meta_bayes_conv2d_forward.1} parent=5 // pred_check
      _
    $region42: #{meta_bayes_conv2d_forward.1} parent=5 // pred_check_branch
      %254 = sbr.rel (%p251) target = $region44
    $region43: #{meta_bayes_conv2d_forward.1} parent=5 // pred_region
      %s255 = ssub.s32 %s12, 1
      %s256 = smul.u32 2, %s22
      %p257 = scmp.lt.s32.totalorder %s21, 1
      %s258 = scalar_select %p257, %s21, 1
      %p259 = scmp.lt.s32.totalorder %s256, 1
      %s260 = scalar_select %p259, %s256, 1
      %s261 = smul.addr %s258, 10
      %s262 = sadd.s32 %s260, %s261
      %s263 = smul.addr %s262, 4
      %s264 = scalar_lea.vmem %s0, %s263
      %p265 = pneg %p52
      %p266 = pneg %p49
      %p267 = pneg %p73
      %p268 = pneg %p70
      %p269 = pneg %p94
      %p270 = pneg %p91
      %p271 = pneg %p115
      %p272 = pneg %p112
      %p273 = pneg %p136
      %p274 = pneg %p133
      %s275 = smul.u32 2, %s22
      %p276 = scmp.lt.s32.totalorder %s21, 1
      %s277 = scalar_select %p276, %s21, 1
      %p278 = scmp.lt.s32.totalorder %s275, 1
      %s279 = scalar_select %p278, %s275, 1
      %s280 = smul.addr %s277, 2
      %s281 = sadd.s32 %s279, %s280
      %s282 = smul.addr %s281, 4
      %s283 = scalar_lea.vmem %s5, %s282
      %p284 = pneg %p164
      %p285 = pneg %p161
      %p286 = pneg %p192
      %p287 = pneg %p189
      %s288 = smul.u32 2, %s22
      %p289 = scmp.lt.s32.totalorder %s21, 1
      %s290 = scalar_select %p289, %s21, 1
      %p291 = scmp.lt.s32.totalorder %s288, 1
      %s292 = scalar_select %p291, %s288, 1
      %s293 = smul.addr %s290, 2
      %s294 = sadd.s32 %s292, %s293
      %s295 = smul.addr %s294, 8
      %s296 = scalar_lea.vmem %s6, %s295
      %s297 = smul.u32 2, %s22
      %p298 = scmp.lt.s32.totalorder %s21, 1
      %s299 = scalar_select %p298, %s21, 1
      %p300 = scmp.lt.s32.totalorder %s297, 1
      %s301 = scalar_select %p300, %s297, 1
      %s302 = smul.addr %s299, 10
      %s303 = sadd.s32 %s301, %s302
      %s304 = smul.addr %s303, 4
      %s305 = scalar_lea.vmem %s0, %s304
      %s306 = smul.u32 2, %s22
      %s307 = smul.u32 2, %s22
      %p308 = scmp.lt.s32.totalorder %s21, 1
      %s309 = scalar_select %p308, %s21, 1
      %p310 = scmp.lt.s32.totalorder %s307, 1
      %s311 = scalar_select %p310, %s307, 1
      %s312 = smul.addr %s309, 2
      %s313 = sadd.s32 %s311, %s312
      %s314 = smul.addr %s313, 4
      %s315 = scalar_lea.vmem %s5, %s314
      %s316 = smul.u32 2, %s22
      %s317 = smul.u32 2, %s22
      %p318 = scmp.lt.s32.totalorder %s21, 1
      %s319 = scalar_select %p318, %s21, 1
      %p320 = scmp.lt.s32.totalorder %s317, 1
      %s321 = scalar_select %p320, %s317, 1
      %s322 = smul.addr %s319, 2
      %s323 = sadd.s32 %s321, %s322
      %s324 = smul.addr %s323, 8
      %s325 = scalar_lea.vmem %s6, %s324
      %s326 = smul.u32 2, %s22
      %v328 = vld [vmem:[%s305] sm:$0xff]
      %v329 = vld [vmem:[%s305 + $0x8] sm:$0xff]
      %v330 = vld [vmem:[%s305 + $0x10] sm:$0xff]
      %v331 = vld [vmem:[%s305 + $0x18] sm:$0xff]
      %v332 = vld [vmem:[%s305 + $0x20] sm:$0x33]
      %v333 = vld [vmem:[%s1] sm:$0xf]
      %v334 = vld [vmem:[%s3] sm:$0xff]
      %336 = vset.pattern.permute.xlu0 0
      %337 = vperm.xlu0 %336, %v334
      %v338 = vpop.permute.xlu0 %337
      %v345 = vunpack.c.l.b16 %v328
      %v346 = vunpack.c.h.b16 %v328
      %v347 = vunpack.c.l.b16 %v329
      %v348 = vunpack.c.h.b16 %v329
      %v349 = vunpack.c.l.b16 %v330
      %v350 = vunpack.c.h.b16 %v330
      %v351 = vunpack.c.l.b16 %v331
      %v352 = vunpack.c.h.b16 %v331
      %v353 = vunpack.c.l.b16 %v332
      %v354 = vunpack.c.h.b16 %v332
      %v355 = vpack.c.b16 %v347, %v345
      %v356 = vpack.c.b16 %v348, %v346
      %v357 = vpack.c.b16 %v351, %v349
      %v358 = vpack.c.b16 %v352, %v350
      %v359 = vpack.c.b16 %v353, %v353
      %v360 = vpack.c.b16 %v354, %v354
      %vm365 = vcmask 293888
      %v367 = vsel %vm365, %v333, 0
      %vm369 = vcmask 1041408
      %v371 = vsel %vm369, %v359, 0
      %v374 = vsel %vm369, %v360, 0
      %376 = vmatprep.subr.bf16.mxu0 0
      %377 = vmatpush1.bf16.msra.mxu0 0
      %378 = vmatprep.subr.bf16.mxu0 0
      %379 = vmatpush1.bf16.msra.mxu0 0
      %380 = vmatprep.subr.bf16.mxu0 0
      %381 = vmatpush1.bf16.msra.mxu0 0
      %382 = vmatprep.subr.bf16.mxu0 0
      %383 = vmatpush1.bf16.msra.mxu0 0
      %384 = vmatprep.subr.bf16.mxu0 0
      %385 = vmatpush1.bf16.msra.mxu0 0
      %386 = vmatprep.subr.bf16.mxu0 %v374
      %387 = vmatpush1.bf16.msra.mxu0 %v371
      %388 = vmatprep.subr.bf16.mxu0 %v358
      %389 = vmatpush1.bf16.msra.mxu0 %v357
      %390 = vmatprep.subr.bf16.mxu0 %v356
      %391 = vmatpush1.bf16.msra.mxu0 %v355
      %392 = vmatprep.subr.bf16.mxu0 0
      %393 = vmatpush2.bf16.msra.mxu0 0
      %394 = vmatprep.subr.bf16.mxu0 0
      %395 = vmatpush2.bf16.msra.mxu0 0
      %396 = vmatprep.subr.bf16.mxu0 0
      %397 = vmatpush2.bf16.msra.mxu0 0
      %398 = vmatprep.subr.bf16.mxu0 0
      %399 = vmatpush2.bf16.msra.mxu0 0
      %400 = vmatprep.subr.bf16.mxu0 0
      %401 = vmatpush2.bf16.msra.mxu0 0
      %402 = vmatprep.subr.bf16.mxu0 0
      %403 = vmatpush2.bf16.msra.mxu0 0
      %404 = vmatprep.subr.bf16.mxu0 0
      %405 = vmatpush2.bf16.msra.mxu0 0
      %406 = vmatprep.subr.bf16.mxu0 0
      %407 = vmatpush2.bf16.msra.mxu0 0
      %408 = vmatprep.mubr.bf16.mxu0 0
      %409 = vmatmul.mubr.bf16.gmra.mxu0 %v367
      %v410 = vpop.f32.mrf.mxu0
      %v411 = vadd.f32 %v338, %v410
      %v412 = vpop.f32.mrf.mxu0
      %v413 = vadd.f32 %v338, %v412
      %v414 = vpop.f32.mrf.mxu0
      %v415 = vpop.f32.mrf.mxu0
      %416 = vdwg.mxu0
      %v417 = vunpack.c.l.bf16 %v328
      %v418 = vunpack.c.h.bf16 %v328
      %v419 = vunpack.c.l.bf16 %v329
      %v420 = vunpack.c.h.bf16 %v329
      %v421 = vunpack.c.l.bf16 %v330
      %v422 = vunpack.c.h.bf16 %v330
      %v423 = vunpack.c.l.bf16 %v331
      %v424 = vunpack.c.h.bf16 %v331
      %v425 = vunpack.c.l.bf16 %v332
      %v426 = vunpack.c.h.bf16 %v332
      %v427 = vmul.f32 %v417, %v417
      %v428 = vmul.f32 %v418, %v418
      %v429 = vmul.f32 %v419, %v419
      %v430 = vmul.f32 %v420, %v420
      %v431 = vmul.f32 %v421, %v421
      %v432 = vmul.f32 %v422, %v422
      %v433 = vmul.f32 %v423, %v423
      %v434 = vmul.f32 %v424, %v424
      %v435 = vmul.f32 %v425, %v425
      %v436 = vmul.f32 %v426, %v426
      %v437 = vpack.c.bf16 %v429, %v427
      %v438 = vpack.c.bf16 %v430, %v428
      %v439 = vpack.c.bf16 %v433, %v431
      %v440 = vpack.c.bf16 %v434, %v432
      %v441 = vpack.c.bf16 %v435, %v435
      %v442 = vpack.c.bf16 %v436, %v436
      %v443 = vld [vmem:[%s2] sm:$0xf]
      %v444 = vld [vmem:[%s4] sm:$0xff]
      %446 = vset.pattern.permute.xlu0 0
      %447 = vperm.xlu0 %446, %v444
      %v448 = vpop.permute.xlu0 %447
      %v451 = vsel %vm365, %v443, 0
      %v454 = vsel %vm369, %v441, 0
      %v457 = vsel %vm369, %v442, 0
      %459 = vmatprep.subr.bf16.mxu0 0
      %460 = vmatpush1.bf16.msra.mxu0 0
      %461 = vmatprep.subr.bf16.mxu0 0
      %462 = vmatpush1.bf16.msra.mxu0 0
      %463 = vmatprep.subr.bf16.mxu0 0
      %464 = vmatpush1.bf16.msra.mxu0 0
      %465 = vmatprep.subr.bf16.mxu0 0
      %466 = vmatpush1.bf16.msra.mxu0 0
      %467 = vmatprep.subr.bf16.mxu0 0
      %468 = vmatpush1.bf16.msra.mxu0 0
      %469 = vmatprep.subr.bf16.mxu0 %v457
      %470 = vmatpush1.bf16.msra.mxu0 %v454
      %471 = vmatprep.subr.bf16.mxu0 %v440
      %472 = vmatpush1.bf16.msra.mxu0 %v439
      %473 = vmatprep.subr.bf16.mxu0 %v438
      %474 = vmatpush1.bf16.msra.mxu0 %v437
      %475 = vmatprep.subr.bf16.mxu0 0
      %476 = vmatpush2.bf16.msra.mxu0 0
      %477 = vmatprep.subr.bf16.mxu0 0
      %478 = vmatpush2.bf16.msra.mxu0 0
      %479 = vmatprep.subr.bf16.mxu0 0
      %480 = vmatpush2.bf16.msra.mxu0 0
      %481 = vmatprep.subr.bf16.mxu0 0
      %482 = vmatpush2.bf16.msra.mxu0 0
      %483 = vmatprep.subr.bf16.mxu0 0
      %484 = vmatpush2.bf16.msra.mxu0 0
      %485 = vmatprep.subr.bf16.mxu0 0
      %486 = vmatpush2.bf16.msra.mxu0 0
      %487 = vmatprep.subr.bf16.mxu0 0
      %488 = vmatpush2.bf16.msra.mxu0 0
      %489 = vmatprep.subr.bf16.mxu0 0
      %490 = vmatpush2.bf16.msra.mxu0 0
      %491 = vmatprep.mubr.bf16.mxu0 0
      %492 = vmatmul.mubr.bf16.gmra.mxu0 %v451
      %v493 = vpop.f32.mrf.mxu0
      %v494 = vadd.f32 %v448, %v493
      %v495 = vpop.f32.mrf.mxu0
      %v496 = vadd.f32 %v448, %v495
      %v497 = vpop.f32.mrf.mxu0
      %v498 = vpop.f32.mrf.mxu0
      %499 = vdwg.mxu0
      %v500 = vrsqrt.pop %v494
      %v501 = vmul.f32 %v494, %v500
      %vm502 = vcmp.eq.f32.partialorder %v494, inf
      %v503 = vsel %vm502, %v494, %v501
      %vm504 = vcmp.eq.f32.partialorder %v494, 0.0
      %v505 = vand.u32 %v494, 2147483648
      %v506 = vsel %vm504, %v505, %v503
      %v507 = vrsqrt.pop %v496
      %v508 = vmul.f32 %v496, %v507
      %vm509 = vcmp.eq.f32.partialorder %v496, inf
      %v510 = vsel %vm509, %v496, %v508
      %vm511 = vcmp.eq.f32.partialorder %v496, 0.0
      %v512 = vand.u32 %v496, 2147483648
      %v513 = vsel %vm511, %v512, %v510
      %v514 = vld [vmem:[%s315] sm:$0xff]
      %v515 = vunpack.c.l.bf16 %v514
      %v516 = vunpack.c.h.bf16 %v514
      %v517 = vmul.f32 %v506, %v515
      %v518 = vmul.f32 %v513, %v516
      %v519 = vadd.f32 %v411, %v517
      %v520 = vadd.f32 %v413, %v518
      %521 = vst [vmem:[%s325] sm:$0xff] %v519
      %522 = vst [vmem:[%s325 + $0x8] sm:$0xff] %v520
      %s523 = smul.u32 2, %s22
      %p524 = scmp.lt.s32.totalorder %s21, 1
      %s525 = scalar_select %p524, %s21, 1
      %p526 = scmp.lt.s32.totalorder %s523, 1
      %s527 = scalar_select %p526, %s523, 1
      %s528 = smul.addr %s525, 2
      %s529 = sadd.s32 %s527, %s528
      %s530 = smul.addr %s529, 8
      %s531 = scalar_lea.vmem %s6, %s530
      // Predicated region
      $region45: #{meta_bayes_conv2d_forward.1} parent=43 // pred_check
        %p532 = pneg %p189
      $region46: #{meta_bayes_conv2d_forward.1} parent=43 // pred_check_branch
        %534 = sbr.rel (%p532) target = $region48
      $region47: #{meta_bayes_conv2d_forward.1} parent=43 // pred_region
        %s535 = smul.u32 2, %s22
      $region48: #{meta_bayes_conv2d_forward.1} parent=43 // pred_fallthru
        _
    $region44: #{meta_bayes_conv2d_forward.1} parent=5 // pred_fallthru
      _
    %p536 = scmp.le.s32.totalorder 2, %s12
    // Predicated region
    $region49: #{meta_bayes_conv2d_forward.1} parent=5 // pred_check
      %p537 = pneg %p536
    $region50: #{meta_bayes_conv2d_forward.1} parent=5 // pred_check_branch
      %539 = sbr.rel (%p537) target = $region52
    $region51: #{meta_bayes_conv2d_forward.1} parent=5 // pred_region
      %s540 = ssub.s32 %s12, 2
      // Predicated region
      $region53: #{meta_bayes_conv2d_forward.1} parent=51 // pred_check
        %p541 = pneg %p195
      $region54: #{meta_bayes_conv2d_forward.1} parent=51 // pred_check_branch
        %543 = sbr.rel (%p541) target = $region56
      $region55: #{meta_bayes_conv2d_forward.1} parent=51 // pred_region
        %s544 = smul.u32 2, %s24
        %p545 = scmp.lt.s32.totalorder %s23, 1
        %s546 = scalar_select %p545, %s23, 1
        %p547 = scmp.lt.s32.totalorder %s544, 1
        %s548 = scalar_select %p547, %s544, 1
        %s549 = smul.addr %s546, 2
        %s550 = sadd.s32 %s548, %s549
        %s551 = smul.addr %s550, 8
        %s552 = scalar_lea.vmem %s6, %s551
      $region56: #{meta_bayes_conv2d_forward.1} parent=51 // pred_fallthru
        _
    $region52: #{meta_bayes_conv2d_forward.1} parent=5 // pred_fallthru
      _
  $region6: #{meta_bayes_conv2d_forward.1} parent=0 // loop_footer
    %s16 = sadd.s32 1, %s12
  $region7: #{meta_bayes_conv2d_forward.1} parent=0 // loop_footer_branch
    %11 = sbr.rel target = $region3
  $region8: #{meta_bayes_conv2d_forward.1} parent=0 // loop_exit
    _

</llo_original>
